<compile_context>
chip_gen: v5e
topology: v5e:2x2
jax: 0.10.0
libtpu: 0.0.40
codegen_flags: <defaults>
</compile_context>

<pallas_src>
import functools

import jax
import jax.numpy as jnp
from jax.experimental import pallas as pl
from jax.experimental.pallas import tpu as pltpu


def _round_up(x, m):
    return ((x + m - 1) // m) * m


def _pad2(a, rows, cols):
    pr, pc = rows - a.shape[0], cols - a.shape[1]
    if pr == 0 and pc == 0:
        return a
    return jnp.pad(a, ((0, pr), (0, pc)))


# ----------------------------------------------------------------------------
# Fused NoisyLinear kernel:  y = x @ (Wmu + Wsig*Weps) + (bmu + bsig*beps)
# Grid = (M tiles, N tiles, K tiles); f32 VMEM accumulator over K.
# ----------------------------------------------------------------------------
def _noisy_linear_kernel(x_ref, wmu_ref, wsig_ref, weps_ref,
                         bmu_ref, bsig_ref, beps_ref,
                         o_ref, acc_ref):
    k = pl.program_id(2)

    @pl.when(k == 0)
    def _():
        acc_ref[...] = jnp.zeros_like(acc_ref)

    # Noisy weight tile, computed on the VPU in f32, cast to bf16 for the MXU.
    w = wmu_ref[...] + wsig_ref[...] * weps_ref[...]
    acc_ref[...] += jnp.dot(
        x_ref[...].astype(jnp.bfloat16),
        w.astype(jnp.bfloat16),
        preferred_element_type=jnp.float32,
    )

    @pl.when(k == pl.num_programs(2) - 1)
    def _():
        b = bmu_ref[...] + bsig_ref[...] * beps_ref[...]        # (1, TN)
        o_ref[...] = (acc_ref[...] + b).astype(o_ref.dtype)


def noisy_linear_forward(x, params, weight_eps, bias_eps,
                         *, tm=512, tn=512, tk=512):
    """x: (M, K) f32.  params hold pre-transposed (K, N) weights.  Returns (M, N)."""
    wmu, wsig = params["weight_mu_t"], params["weight_sigma_t"]   # (K, N)
    bmu, bsig = params["bias_mu"], params["bias_sigma"]           # (N,)
    M, K = x.shape
    Kw, N = wmu.shape
    assert K == Kw and weight_eps.shape == (K, N) and bias_eps.shape == (N,)

    # (8, 128)-aligned padded extents and tile sizes.
    Mp = _round_up(M, 8)
    Kp = _round_up(K, 128)
    Np = _round_up(N, 128)
    TM = Mp if Mp <= tm else tm
    TK = Kp if Kp <= tk else tk
    TN = Np if Np <= tn else tn
    Mp = _round_up(Mp, TM)
    Kp = _round_up(Kp, TK)
    Np = _round_up(Np, TN)

    f32 = jnp.float32
    xp = _pad2(x.astype(f32), Mp, Kp)
    wmu_p = _pad2(wmu.astype(f32), Kp, Np)
    wsig_p = _pad2(wsig.astype(f32), Kp, Np)
    weps_p = _pad2(weight_eps.astype(f32), Kp, Np)
    bmu_p = _pad2(bmu.astype(f32).reshape(1, N), 1, Np)
    bsig_p = _pad2(bsig.astype(f32).reshape(1, N), 1, Np)
    beps_p = _pad2(bias_eps.astype(f32).reshape(1, N), 1, Np)

    grid = (Mp // TM, Np // TN, Kp // TK)

    out = pl.pallas_call(
        _noisy_linear_kernel,
        out_shape=jax.ShapeDtypeStruct((Mp, Np), jnp.float32),
        grid_spec=pltpu.PrefetchScalarGridSpec(
            num_scalar_prefetch=0,
            grid=grid,
            in_specs=[
                pl.BlockSpec((TM, TK), lambda i, j, k: (i, k)),   # x tile
                pl.BlockSpec((TK, TN), lambda i, j, k: (k, j)),   # weight_mu
                pl.BlockSpec((TK, TN), lambda i, j, k: (k, j)),   # weight_sigma
                pl.BlockSpec((TK, TN), lambda i, j, k: (k, j)),   # weight_eps
                pl.BlockSpec((1, TN), lambda i, j, k: (0, j)),    # bias_mu
                pl.BlockSpec((1, TN), lambda i, j, k: (0, j)),    # bias_sigma
                pl.BlockSpec((1, TN), lambda i, j, k: (0, j)),    # bias_eps
            ],
            out_specs=pl.BlockSpec((TM, TN), lambda i, j, k: (i, j)),
            scratch_shapes=[pltpu.VMEM((TM, TN), jnp.float32)],
        ),
        compiler_params=pltpu.CompilerParams(
            dimension_semantics=("parallel", "parallel", "arbitrary")),
    )(xp, wmu_p, wsig_p, weps_p, bmu_p, bsig_p, beps_p)

    if Mp != M or Np != N:
        out = out[:M, :N]
    return out


# ----------------------------------------------------------------------------
# Parameter init (matches torch NoisyLinear.reset_parameters) + noise sampling
# ----------------------------------------------------------------------------
def init_noisy_linear_params(key, in_features, out_features, sigma_init=0.017):
    kw, kb = jax.random.split(key)
    std = 1.0 / (in_features ** 0.5)
    return {
        # stored pre-transposed: (in_features, out_features)
        "weight_mu_t": jax.random.uniform(
            kw, (in_features, out_features), jnp.float32, -std, std),
        "weight_sigma_t": jnp.full((in_features, out_features), sigma_init, jnp.float32),
        "bias_mu": jax.random.uniform(kb, (out_features,), jnp.float32, -std, std),
        "bias_sigma": jnp.full((out_features,), sigma_init, jnp.float32),
    }


def sample_noise(key, in_features, out_features):
    kw, kb = jax.random.split(key)
    weight_eps = jax.random.normal(kw, (in_features, out_features), jnp.float32)
    bias_eps = jax.random.normal(kb, (out_features,), jnp.float32)
    return weight_eps, bias_eps


def _reference(x, params, weight_eps, bias_eps):
    w = params["weight_mu_t"] + params["weight_sigma_t"] * weight_eps
    b = params["bias_mu"] + params["bias_sigma"] * bias_eps
    return x @ w + b


if __name__ == "__main__":
    key = jax.random.PRNGKey(0)

    # --- small case: batch=2, in=128, out=32 (N padded to 128 inside wrapper)
    k1, k2, k3, k4, k5, k6 = jax.random.split(key, 6)
    in_f, out_f, batch = 128, 32, 2
    params = init_noisy_linear_params(k1, in_f, out_f)
    x = jax.random.normal(k2, (batch, in_f), jnp.float32)
    w_eps, b_eps = sample_noise(k3, in_f, out_f)

    y = noisy_linear_forward(x, params, w_eps, b_eps)
    jax.block_until_ready(y)
    assert y.shape == (batch, out_f)
    y_ref = _reference(x, params, w_eps, b_eps)
    assert jnp.allclose(y, y_ref, atol=1e-1, rtol=1e-1), "small-case mismatch"

    # --- second case exercising the K-tiled accumulator path (grid K > 1)
    in_f2, out_f2, batch2 = 640, 384, 16
    params2 = init_noisy_linear_params(k4, in_f2, out_f2)
    x2 = jax.random.normal(k5, (batch2, in_f2), jnp.float32)
    w_eps2, b_eps2 = sample_noise(k6, in_f2, out_f2)

    y2 = noisy_linear_forward(x2, params2, w_eps2, b_eps2)
    jax.block_until_ready(y2)
    assert y2.shape == (batch2, out_f2)
    y2_ref = _reference(x2, params2, w_eps2, b_eps2)
    assert jnp.allclose(y2, y2_ref, atol=2e-1, rtol=1e-1), "large-case mismatch"

    print("KERNEL_OK")
</pallas_src>

<mosaic_0001>
module attributes {stable_mosaic.version = 11 : i64} {
  func.func @_noisy_linear_kernel(%arg0: i32, %arg1: i32, %arg2: i32, %arg3: memref<8x128xf32, #tpu.memory_space<vmem>>, %arg4: memref<128x128xf32, #tpu.memory_space<vmem>>, %arg5: memref<128x128xf32, #tpu.memory_space<vmem>>, %arg6: memref<128x128xf32, #tpu.memory_space<vmem>>, %arg7: memref<1x128xf32, #tpu.memory_space<vmem>>, %arg8: memref<1x128xf32, #tpu.memory_space<vmem>>, %arg9: memref<1x128xf32, #tpu.memory_space<vmem>>, %arg10: memref<8x128xf32, #tpu.memory_space<vmem>>, %arg11: memref<8x128xf32, #tpu.memory_space<vmem>>) attributes {dimension_semantics = [#tpu.dimension_semantics<parallel>, #tpu.dimension_semantics<parallel>, #tpu.dimension_semantics<arbitrary>], iteration_bounds = array<i64: 1, 1, 1>, scalar_prefetch = 0 : i64, scratch_operands = 1 : i64, tpu.core_type = #tpu.core_type<tc>, window_params = [{transform_indices = @transform_0, window_bounds = array<i64: 8, 128>}, {transform_indices = @transform_1, window_bounds = array<i64: 128, 128>}, {transform_indices = @transform_2, window_bounds = array<i64: 128, 128>}, {transform_indices = @transform_3, window_bounds = array<i64: 128, 128>}, {transform_indices = @transform_4, window_bounds = array<i64: 1, 128>}, {transform_indices = @transform_5, window_bounds = array<i64: 1, 128>}, {transform_indices = @transform_6, window_bounds = array<i64: 1, 128>}, {transform_indices = @transform_7, window_bounds = array<i64: 8, 128>}]} {
    %c0_i32 = arith.constant 0 : i32
    %0 = arith.cmpi eq, %arg2, %c0_i32 : i32
    %1 = arith.extui %0 : i1 to i32
    %c0_i32_0 = arith.constant 0 : i32
    %2 = arith.cmpi ne, %1, %c0_i32_0 : i32
    scf.if %2 {
      %cst_14 = arith.constant 0.000000e+00 : f32
      %18 = vector.broadcast %cst_14 : f32 to vector<8x128xf32>
      %c0_15 = arith.constant 0 : index
      %c0_16 = arith.constant 0 : index
      %19 = vector.load %arg11[%c0_15, %c0_16] : memref<8x128xf32, #tpu.memory_space<vmem>>, vector<8x128xf32>
      tpu.vector_store %arg11[%c0_15, %c0_16], %18 {strides = array<i32>} : memref<8x128xf32, #tpu.memory_space<vmem>>, vector<8x128xf32>,
    } else {
    }
    %c0 = arith.constant 0 : index
    %c0_1 = arith.constant 0 : index
    %3 = vector.load %arg4[%c0, %c0_1] : memref<128x128xf32, #tpu.memory_space<vmem>>, vector<128x128xf32>
    %c0_2 = arith.constant 0 : index
    %c0_3 = arith.constant 0 : index
    %4 = vector.load %arg5[%c0_2, %c0_3] : memref<128x128xf32, #tpu.memory_space<vmem>>, vector<128x128xf32>
    %c0_4 = arith.constant 0 : index
    %c0_5 = arith.constant 0 : index
    %5 = vector.load %arg6[%c0_4, %c0_5] : memref<128x128xf32, #tpu.memory_space<vmem>>, vector<128x128xf32>
    %6 = arith.mulf %4, %5 : vector<128x128xf32>
    %7 = arith.addf %3, %6 : vector<128x128xf32>
    %c0_6 = arith.constant 0 : index
    %c0_7 = arith.constant 0 : index
    %8 = vector.load %arg11[%c0_6, %c0_7] : memref<8x128xf32, #tpu.memory_space<vmem>>, vector<8x128xf32>
    %c0_8 = arith.constant 0 : index
    %c0_9 = arith.constant 0 : index
    %9 = vector.load %arg3[%c0_8, %c0_9] : memref<8x128xf32, #tpu.memory_space<vmem>>, vector<8x128xf32>
    %10 = arith.truncf %9 : vector<8x128xf32> to vector<8x128xbf16>
    %11 = arith.truncf %7 : vector<128x128xf32> to vector<128x128xbf16>
    %cst = arith.constant dense<0.000000e+00> : vector<8x128xf32>
    %12 = tpu.matmul %10, %11, %cst {dimension_numbers = #tpu.dot_dimension_numbers<[1], [0], [0], [1], [0, 0, 1, 1], [], []>} : vector<8x128xbf16>, vector<128x128xbf16>, vector<8x128xf32> -> vector<8x128xf32>
    %13 = arith.addf %8, %12 : vector<8x128xf32>
    %c0_10 = arith.constant 0 : index
    %c0_11 = arith.constant 0 : index
    %14 = vector.load %arg11[%c0_10, %c0_11] : memref<8x128xf32, #tpu.memory_space<vmem>>, vector<8x128xf32>
    tpu.vector_store %arg11[%c0_10, %c0_11], %13 {strides = array<i32>} : memref<8x128xf32, #tpu.memory_space<vmem>>, vector<8x128xf32>,
    %c0_i32_12 = arith.constant 0 : i32
    %15 = arith.cmpi eq, %arg2, %c0_i32_12 : i32
    %16 = arith.extui %15 : i1 to i32
    %c0_i32_13 = arith.constant 0 : i32
    %17 = arith.cmpi ne, %16, %c0_i32_13 : i32
    scf.if %17 {
      %c0_14 = arith.constant 0 : index
      %c0_15 = arith.constant 0 : index
      %18 = vector.load %arg7[%c0_14, %c0_15] : memref<1x128xf32, #tpu.memory_space<vmem>>, vector<1x128xf32>
      %c0_16 = arith.constant 0 : index
      %c0_17 = arith.constant 0 : index
      %19 = vector.load %arg8[%c0_16, %c0_17] : memref<1x128xf32, #tpu.memory_space<vmem>>, vector<1x128xf32>
      %c0_18 = arith.constant 0 : index
      %c0_19 = arith.constant 0 : index
      %20 = vector.load %arg9[%c0_18, %c0_19] : memref<1x128xf32, #tpu.memory_space<vmem>>, vector<1x128xf32>
      %21 = arith.mulf %19, %20 : vector<1x128xf32>
      %22 = arith.addf %18, %21 : vector<1x128xf32>
      %c0_20 = arith.constant 0 : index
      %c0_21 = arith.constant 0 : index
      %23 = vector.load %arg11[%c0_20, %c0_21] : memref<8x128xf32, #tpu.memory_space<vmem>>, vector<8x128xf32>
      %24 = vector.broadcast %22 : vector<1x128xf32> to vector<8x128xf32>
      %25 = arith.addf %23, %24 : vector<8x128xf32>
      %c0_22 = arith.constant 0 : index
      %c0_23 = arith.constant 0 : index
      %26 = vector.load %arg10[%c0_22, %c0_23] : memref<8x128xf32, #tpu.memory_space<vmem>>, vector<8x128xf32>
      tpu.vector_store %arg10[%c0_22, %c0_23], %25 {strides = array<i32>} : memref<8x128xf32, #tpu.memory_space<vmem>>, vector<8x128xf32>,
    } else {
    }
    return
  }
  func.func @transform_0(%arg0: i32, %arg1: i32, %arg2: i32) -> (i32, i32) {
    %c0_i32 = arith.constant 0 : i32
    return %arg0, %arg2 : i32, i32
  }
  func.func @transform_1(%arg0: i32, %arg1: i32, %arg2: i32) -> (i32, i32) {
    %c0_i32 = arith.constant 0 : i32
    return %arg2, %arg1 : i32, i32
  }
  func.func @transform_2(%arg0: i32, %arg1: i32, %arg2: i32) -> (i32, i32) {
    %c0_i32 = arith.constant 0 : i32
    return %arg2, %arg1 : i32, i32
  }
  func.func @transform_3(%arg0: i32, %arg1: i32, %arg2: i32) -> (i32, i32) {
    %c0_i32 = arith.constant 0 : i32
    return %arg2, %arg1 : i32, i32
  }
  func.func @transform_4(%arg0: i32, %arg1: i32, %arg2: i32) -> (i32, i32) {
    %c0_i32 = arith.constant 0 : i32
    %c0_i32_0 = arith.constant 0 : i32
    return %c0_i32, %arg1 : i32, i32
  }
  func.func @transform_5(%arg0: i32, %arg1: i32, %arg2: i32) -> (i32, i32) {
    %c0_i32 = arith.constant 0 : i32
    %c0_i32_0 = arith.constant 0 : i32
    return %c0_i32, %arg1 : i32, i32
  }
  func.func @transform_6(%arg0: i32, %arg1: i32, %arg2: i32) -> (i32, i32) {
    %c0_i32 = arith.constant 0 : i32
    %c0_i32_0 = arith.constant 0 : i32
    return %c0_i32, %arg1 : i32, i32
  }
  func.func @transform_7(%arg0: i32, %arg1: i32, %arg2: i32) -> (i32, i32) {
    %c0_i32 = arith.constant 0 : i32
    return %arg0, %arg1 : i32, i32
  }
}

</mosaic_0001>

<llo_original>
// kernel: tpu_custom_call.1
$region0: #{tpu_custom_call.1}
  #allocation0 [shape = 'u32[]', space=smem, size = 0x4, offset = 0x4, fixed_abs, tag = 'smem constant byte address 0x4 - core index']
  #allocation1 [shape = 'u32[72,128]{1,0:T(1,128)}', space=vmem, size = 0x9000, scoped, tag = 'internal scratch']
  #allocation2 [shape = 'f32[8,128]{1,0:T(8,128)}', space=vmem, size = 0x1000, scoped, tag = 'scratch operand']
  %s0 = inlined_call_operand.hbm [shape: f32[8,128], index: 0, kind: input, shape index: {}]
  %s1 = inlined_call_operand.hbm [shape: f32[128,128], index: 1, kind: input, shape index: {}]
  %s2 = inlined_call_operand.hbm [shape: f32[128,128], index: 2, kind: input, shape index: {}]
  %s3 = inlined_call_operand.hbm [shape: f32[128,128], index: 3, kind: input, shape index: {}]
  %s4 = inlined_call_operand.vmem [shape: f32[1,128], index: 4, kind: input, shape index: {}]
  %s5 = inlined_call_operand.vmem [shape: f32[1,128], index: 5, kind: input, shape index: {}]
  %s6 = inlined_call_operand.vmem [shape: f32[1,128], index: 6, kind: input, shape index: {}]
  %s7 = inlined_call_operand.hbm [shape: f32[8,128], index: 7, kind: output, shape index: {}]
  %s8 = sld [smem:[#allocation0]]
  $region62: #{tpu_custom_call.1} parent=0
    _
  %s10 = ssub.s32 1, %s8
  %s11 = scalar_select 0, %s10, %s8
  $region1: #{tpu_custom_call.1} parent=0
    #allocation3 [shape = 'u8[4096]{0}', space=vmem, size = 0x1000, scoped, tag = 'input window, operand 0, single buffered']
    #allocation4 [shape = 's32[1]{0}', space=sflag, size = 0x4, scoped, tag = 'scoped memory for tpu_custom_call.1']
    #allocation5 [shape = 's32[1]{0}', space=sflag, size = 0x4, scoped, tag = 'scoped memory for tpu_custom_call.1']
    #allocation6 [shape = 'u8[65536]{0}', space=vmem, size = 0x10000, scoped, tag = 'input window, operand 1, single buffered']
    #allocation7 [shape = 's32[1]{0}', space=sflag, size = 0x4, scoped, tag = 'scoped memory for tpu_custom_call.1']
    #allocation8 [shape = 'u8[65536]{0}', space=vmem, size = 0x10000, scoped, tag = 'input window, operand 2, single buffered']
    #allocation9 [shape = 'u8[65536]{0}', space=vmem, size = 0x10000, scoped, tag = 'input window, operand 3, single buffered']
    #allocation10 [shape = 's32[1]{0}', space=sflag, size = 0x4, scoped, tag = 'scoped memory for tpu_custom_call.1']
    #allocation11 [shape = 'u8[4096]{0}', space=vmem, size = 0x1000, scoped, tag = 'output window, operand 0, single buffered']
    %12 = vsyncpa [#allocation4], 0
    %13 = vsyncpa [#allocation7], 0
    %14 = vsyncpa [#allocation10], 0
    %15 = vsyncpa [#allocation5], 0
    // Predicated region
    $region2: #{tpu_custom_call.1} parent=1 // pred_check
      _
    $region3: #{tpu_custom_call.1} parent=1 // pred_check_branch
      %17 = sbr.rel (0) target = $region5
    $region4: #{tpu_custom_call.1} parent=1 // pred_region
      %19 = vsyncadd [#allocation4], 0
      %s21 = sshll.u32 %s0, 4
      %s22 = int_to_ptr.hbm [resolvable:$true] %s21
      %s23 = sshll.u32 [#allocation3], 4
      %s24 = int_to_ptr.vmem [resolvable:$true] %s23
      %26 = dma.hbm_to_vmem [thread:$0]  %s22, 128, %s24, [#allocation4]
    $region5: #{tpu_custom_call.1} parent=1 // pred_fallthru
      _
    // Predicated region
    $region6: #{tpu_custom_call.1} parent=1 // pred_check
      _
    $region7: #{tpu_custom_call.1} parent=1 // pred_check_branch
      %28 = sbr.rel (0) target = $region9
    $region8: #{tpu_custom_call.1} parent=1 // pred_region
      %30 = vsyncadd [#allocation7], 0
      %s31 = sshll.u32 %s1, 4
      %s32 = int_to_ptr.hbm [resolvable:$true] %s31
      %s33 = sshll.u32 [#allocation6], 4
      %s34 = int_to_ptr.vmem [resolvable:$true] %s33
      %39 = dma.hbm_to_vmem [thread:$0]  %s32, 2048, %s34, [#allocation7], 128, 128, 8
    $region9: #{tpu_custom_call.1} parent=1 // pred_fallthru
      _
    // Predicated region
    $region10: #{tpu_custom_call.1} parent=1 // pred_check
      _
    $region11: #{tpu_custom_call.1} parent=1 // pred_check_branch
      %41 = sbr.rel (0) target = $region13
    $region12: #{tpu_custom_call.1} parent=1 // pred_region
      %43 = vsyncadd [#allocation7], 0
      %s44 = sshll.u32 %s2, 4
      %s45 = int_to_ptr.hbm [resolvable:$true] %s44
      %s46 = sshll.u32 [#allocation8], 4
      %s47 = int_to_ptr.vmem [resolvable:$true] %s46
      %52 = dma.hbm_to_vmem [thread:$0]  %s45, 2048, %s47, [#allocation7], 128, 128, 8
    $region13: #{tpu_custom_call.1} parent=1 // pred_fallthru
      _
    // Predicated region
    $region14: #{tpu_custom_call.1} parent=1 // pred_check
      _
    $region15: #{tpu_custom_call.1} parent=1 // pred_check_branch
      %54 = sbr.rel (0) target = $region17
    $region16: #{tpu_custom_call.1} parent=1 // pred_region
      %56 = vsyncadd [#allocation10], 0
      %s57 = sshll.u32 %s3, 4
      %s58 = int_to_ptr.hbm [resolvable:$true] %s57
      %s59 = sshll.u32 [#allocation9], 4
      %s60 = int_to_ptr.vmem [resolvable:$true] %s59
      %65 = dma.hbm_to_vmem [thread:$0]  %s58, 2048, %s60, [#allocation10], 128, 128, 8
    $region17: #{tpu_custom_call.1} parent=1 // pred_fallthru
      _
    // Predicated region
    $region18: #{tpu_custom_call.1} parent=1 // pred_check
      _
    $region19: #{tpu_custom_call.1} parent=1 // pred_check_branch
      %67 = sbr.rel (0) target = $region21
    $region20: #{tpu_custom_call.1} parent=1 // pred_region
      _
    $region21: #{tpu_custom_call.1} parent=1 // pred_fallthru
      _
    // Predicated region
    $region22: #{tpu_custom_call.1} parent=1 // pred_check
      _
    $region23: #{tpu_custom_call.1} parent=1 // pred_check_branch
      %69 = sbr.rel (0) target = $region25
    $region24: #{tpu_custom_call.1} parent=1 // pred_region
      _
    $region25: #{tpu_custom_call.1} parent=1 // pred_fallthru
      _
    // Predicated region
    $region26: #{tpu_custom_call.1} parent=1 // pred_check
      _
    $region27: #{tpu_custom_call.1} parent=1 // pred_check_branch
      %71 = sbr.rel (0) target = $region29
    $region28: #{tpu_custom_call.1} parent=1 // pred_region
      _
    $region29: #{tpu_custom_call.1} parent=1 // pred_fallthru
      _
    // Predicated region
    $region30: #{tpu_custom_call.1} parent=1 // pred_check
      _
    $region31: #{tpu_custom_call.1} parent=1 // pred_check_branch
      %73 = sbr.rel (0) target = $region33
    $region32: #{tpu_custom_call.1} parent=1 // pred_region
      %75 = dma.done [#allocation4], 128
    $region33: #{tpu_custom_call.1} parent=1 // pred_fallthru
      _
    // Predicated region
    $region34: #{tpu_custom_call.1} parent=1 // pred_check
      _
    $region35: #{tpu_custom_call.1} parent=1 // pred_check_branch
      %77 = sbr.rel (0) target = $region37
    $region36: #{tpu_custom_call.1} parent=1 // pred_region
      %79 = dma.done [#allocation7], 2048
    $region37: #{tpu_custom_call.1} parent=1 // pred_fallthru
      _
    // Predicated region
    $region38: #{tpu_custom_call.1} parent=1 // pred_check
      _
    $region39: #{tpu_custom_call.1} parent=1 // pred_check_branch
      %81 = sbr.rel (0) target = $region41
    $region40: #{tpu_custom_call.1} parent=1 // pred_region
      %83 = dma.done [#allocation7], 2048
    $region41: #{tpu_custom_call.1} parent=1 // pred_fallthru
      _
    // Predicated region
    $region42: #{tpu_custom_call.1} parent=1 // pred_check
      _
    $region43: #{tpu_custom_call.1} parent=1 // pred_check_branch
      %85 = sbr.rel (0) target = $region45
    $region44: #{tpu_custom_call.1} parent=1 // pred_region
      %87 = dma.done [#allocation10], 2048
    $region45: #{tpu_custom_call.1} parent=1 // pred_fallthru
      _
    %p88 = scmp.eq.s32.totalorder 0, 0
    // Predicated region
    $region46: #{tpu_custom_call.1} parent=1 // pred_check
      %p89 = pneg %p88
    $region47: #{tpu_custom_call.1} parent=1 // pred_check_branch
      %91 = sbr.rel (%p89) target = $region49
    $region48: #{tpu_custom_call.1} parent=1 // pred_region
      %92 = vst [vmem:[#allocation2] sm:$0xff] 0.0
    $region49: #{tpu_custom_call.1} parent=1 // pred_fallthru
      _
    %v93 = vld [vmem:[#allocation6] sm:$0xff]
    %v94 = vld [vmem:[#allocation6 + $0x8] sm:$0xff]
    %v95 = vld [vmem:[#allocation6 + $0x10] sm:$0xff]
    %v96 = vld [vmem:[#allocation6 + $0x18] sm:$0xff]
    %v97 = vld [vmem:[#allocation6 + $0x20] sm:$0xff]
    %v98 = vld [vmem:[#allocation6 + $0x28] sm:$0xff]
    %v99 = vld [vmem:[#allocation6 + $0x30] sm:$0xff]
    %v100 = vld [vmem:[#allocation6 + $0x38] sm:$0xff]
    %v101 = vld [vmem:[#allocation6 + $0x40] sm:$0xff]
    %v102 = vld [vmem:[#allocation6 + $0x48] sm:$0xff]
    %v103 = vld [vmem:[#allocation6 + $0x50] sm:$0xff]
    %v104 = vld [vmem:[#allocation6 + $0x58] sm:$0xff]
    %v105 = vld [vmem:[#allocation6 + $0x60] sm:$0xff]
    %v106 = vld [vmem:[#allocation6 + $0x68] sm:$0xff]
    %v107 = vld [vmem:[#allocation6 + $0x70] sm:$0xff]
    %v108 = vld [vmem:[#allocation6 + $0x78] sm:$0xff]
    %v109 = vld [vmem:[#allocation8] sm:$0xff]
    %v110 = vld [vmem:[#allocation8 + $0x8] sm:$0xff]
    %v111 = vld [vmem:[#allocation8 + $0x10] sm:$0xff]
    %v112 = vld [vmem:[#allocation8 + $0x18] sm:$0xff]
    %v113 = vld [vmem:[#allocation8 + $0x20] sm:$0xff]
    %v114 = vld [vmem:[#allocation8 + $0x28] sm:$0xff]
    %v115 = vld [vmem:[#allocation8 + $0x30] sm:$0xff]
    %v116 = vld [vmem:[#allocation8 + $0x38] sm:$0xff]
    %v117 = vld [vmem:[#allocation8 + $0x40] sm:$0xff]
    %v118 = vld [vmem:[#allocation8 + $0x48] sm:$0xff]
    %v119 = vld [vmem:[#allocation8 + $0x50] sm:$0xff]
    %v120 = vld [vmem:[#allocation8 + $0x58] sm:$0xff]
    %v121 = vld [vmem:[#allocation8 + $0x60] sm:$0xff]
    %v122 = vld [vmem:[#allocation8 + $0x68] sm:$0xff]
    %v123 = vld [vmem:[#allocation8 + $0x70] sm:$0xff]
    %v124 = vld [vmem:[#allocation8 + $0x78] sm:$0xff]
    %v125 = vld [vmem:[#allocation9] sm:$0xff]
    %v126 = vld [vmem:[#allocation9 + $0x8] sm:$0xff]
    %v127 = vld [vmem:[#allocation9 + $0x10] sm:$0xff]
    %v128 = vld [vmem:[#allocation9 + $0x18] sm:$0xff]
    %v129 = vld [vmem:[#allocation9 + $0x20] sm:$0xff]
    %v130 = vld [vmem:[#allocation9 + $0x28] sm:$0xff]
    %v131 = vld [vmem:[#allocation9 + $0x30] sm:$0xff]
    %v132 = vld [vmem:[#allocation9 + $0x38] sm:$0xff]
    %v133 = vld [vmem:[#allocation9 + $0x40] sm:$0xff]
    %v134 = vld [vmem:[#allocation9 + $0x48] sm:$0xff]
    %v135 = vld [vmem:[#allocation9 + $0x50] sm:$0xff]
    %v136 = vld [vmem:[#allocation9 + $0x58] sm:$0xff]
    %v137 = vld [vmem:[#allocation9 + $0x60] sm:$0xff]
    %v138 = vld [vmem:[#allocation9 + $0x68] sm:$0xff]
    %v139 = vld [vmem:[#allocation9 + $0x70] sm:$0xff]
    %v140 = vld [vmem:[#allocation9 + $0x78] sm:$0xff]
    %v141 = vmul.f32 %v109, %v125
    %v142 = vmul.f32 %v110, %v126
    %v143 = vmul.f32 %v111, %v127
    %v144 = vmul.f32 %v112, %v128
    %v145 = vmul.f32 %v113, %v129
    %v146 = vmul.f32 %v114, %v130
    %v147 = vmul.f32 %v115, %v131
    %v148 = vmul.f32 %v116, %v132
    %v149 = vmul.f32 %v117, %v133
    %v150 = vmul.f32 %v118, %v134
    %v151 = vmul.f32 %v119, %v135
    %v152 = vmul.f32 %v120, %v136
    %v153 = vmul.f32 %v121, %v137
    %v154 = vmul.f32 %v122, %v138
    %v155 = vmul.f32 %v123, %v139
    %v156 = vmul.f32 %v124, %v140
    %v157 = vadd.f32 %v93, %v141
    %v158 = vadd.f32 %v94, %v142
    %v159 = vadd.f32 %v95, %v143
    %v160 = vadd.f32 %v96, %v144
    %v161 = vadd.f32 %v97, %v145
    %v162 = vadd.f32 %v98, %v146
    %v163 = vadd.f32 %v99, %v147
    %v164 = vadd.f32 %v100, %v148
    %v165 = vadd.f32 %v101, %v149
    %v166 = vadd.f32 %v102, %v150
    %v167 = vadd.f32 %v103, %v151
    %v168 = vadd.f32 %v104, %v152
    %v169 = vadd.f32 %v105, %v153
    %v170 = vadd.f32 %v106, %v154
    %v171 = vadd.f32 %v107, %v155
    %v172 = vadd.f32 %v108, %v156
    %v173 = vld [vmem:[#allocation2] sm:$0xff]
    %v174 = vld [vmem:[#allocation3] sm:$0xff]
    %v175 = vpack.c.bf16 %v174, %v174
    %v176 = vpack.c.bf16 %v158, %v157
    %v177 = vpack.c.bf16 %v160, %v159
    %v178 = vpack.c.bf16 %v162, %v161
    %v179 = vpack.c.bf16 %v164, %v163
    %v180 = vpack.c.bf16 %v166, %v165
    %v181 = vpack.c.bf16 %v168, %v167
    %v182 = vpack.c.bf16 %v170, %v169
    %v183 = vpack.c.bf16 %v172, %v171
    %184 = vmatpush.bf16.msra.mxu0 %v183
    %185 = vmatpush.bf16.msra.mxu0 %v182
    %186 = vmatpush.bf16.msra.mxu0 %v181
    %187 = vmatpush.bf16.msra.mxu0 %v180
    %188 = vmatpush.bf16.msra.mxu0 %v179
    %189 = vmatpush.bf16.msra.mxu0 %v178
    %190 = vmatpush.bf16.msra.mxu0 %v177
    %191 = vmatpush.bf16.msra.mxu0 %v176
    %192 = vmatmul.bf16.gmra.mxu0 %v175
    %v193 = vpop.f32.mrf.mxu0
    %v194 = vadd.f32 0.0, %v193
    %v195 = vpop.f32.mrf.mxu0
    %196 = vdwg.mxu0
    %v197 = vadd.f32 %v173, %v194
    %198 = vst [vmem:[#allocation2] sm:$0xff] %v197
    // Predicated region
    $region50: #{tpu_custom_call.1} parent=1 // pred_check
      %p199 = pneg %p88
    $region51: #{tpu_custom_call.1} parent=1 // pred_check_branch
      %201 = sbr.rel (%p199) target = $region53
    $region52: #{tpu_custom_call.1} parent=1 // pred_region
      %v202 = vld [vmem:[%s4] sm:$0x1]
      %v203 = vld [vmem:[%s5] sm:$0x1]
      %v204 = vld [vmem:[%s6] sm:$0x1]
      %v205 = vmul.f32 %v203, %v204
      %v206 = vadd.f32 %v202, %v205
      %v207 = vld [vmem:[#allocation2] sm:$0xff]
      %v209 = vperm.slane %v206, 0
      %v211 = vadd.f32 %v207, %v209
      %212 = vst [vmem:[#allocation11] sm:$0xff] %v211
    $region53: #{tpu_custom_call.1} parent=1 // pred_fallthru
      _
    // Predicated region
    $region54: #{tpu_custom_call.1} parent=1 // pred_check
      _
    $region55: #{tpu_custom_call.1} parent=1 // pred_check_branch
      %214 = sbr.rel (0) target = $region57
    $region56: #{tpu_custom_call.1} parent=1 // pred_region
      %216 = vsyncadd [#allocation5], 0
      %s218 = sshll.u32 [#allocation11], 4
      %s219 = int_to_ptr.vmem [resolvable:$true] %s218
      %s220 = sshll.u32 %s7, 4
      %s221 = int_to_ptr.hbm [resolvable:$true] %s220
      %223 = dma.vmem_to_hbm [thread:$0]  %s219, 128, %s221, [#allocation5]
    $region57: #{tpu_custom_call.1} parent=1 // pred_fallthru
      _
    // Predicated region
    $region58: #{tpu_custom_call.1} parent=1 // pred_check
      _
    $region59: #{tpu_custom_call.1} parent=1 // pred_check_branch
      %225 = sbr.rel (0) target = $region61
    $region60: #{tpu_custom_call.1} parent=1 // pred_region
      %227 = dma.done [#allocation5], 128
    $region61: #{tpu_custom_call.1} parent=1 // pred_fallthru
      _
    %228 = vsyncpa [#allocation4], 1
    %229 = vsyncpa [#allocation7], 1
    %230 = vsyncpa [#allocation10], 1
    %231 = vsyncpa [#allocation5], 1

</llo_original>
